<compile_context>
chip_gen: v7x
topology: tpu7x:2x2x1
jax: 0.10.0
libtpu: 0.0.40
codegen_flags: <defaults>
</compile_context>

<pallas_src>
import functools

import jax
import jax.numpy as jnp
from jax.experimental import pallas as pl
from jax.experimental.pallas import tpu as pltpu

n_disc = 16
n_z = 100

_LAYER_DIMS = [(n_z, n_disc * 4), (n_disc * 4, n_disc * 2),
               (n_disc * 2, n_disc), (n_disc, 1)]


def _round_up(x, m):
    return (x + m - 1) // m * m


def dz_kernel(z_ref, w1_ref, b1_ref, w2_ref, b2_ref, w3_ref, b3_ref,
              w4_ref, b4_ref, o_ref):
    # z tile: (TILE_B, n_z) -> transpose once so batch rides the lane axis;
    # all intermediates then stay lane-dense (feature dims 64/32/16/1 sit on
    # the 8-wide sublane axis instead of wasting lanes).
    x = z_ref[...].T                                                 # (n_z, TILE_B)

    h = jnp.dot(w1_ref[...], x, preferred_element_type=jnp.float32) + b1_ref[...]
    h = jnp.maximum(h, 0.0)                                          # (64, TILE_B)

    h = jnp.dot(w2_ref[...], h, preferred_element_type=jnp.float32) + b2_ref[...]
    h = jnp.maximum(h, 0.0)                                          # (32, TILE_B)

    h = jnp.dot(w3_ref[...], h, preferred_element_type=jnp.float32) + b3_ref[...]
    h = jnp.maximum(h, 0.0)                                          # (16, TILE_B)

    logits = jnp.dot(w4_ref[...], h, preferred_element_type=jnp.float32) + b4_ref[...]
    # (1, TILE_B) lane-dense store (sigmoid runs on the EUP slot).
    o_ref[...] = jax.nn.sigmoid(logits).reshape(o_ref.shape).astype(o_ref.dtype)


@functools.partial(jax.jit, static_argnames=("max_tile_b",))
def dz_forward(z, params, *, max_tile_b=8192):
    """z: (B, n_z) float32. params: PyTorch-layout weights (out,in), biases (out,1)."""
    B = z.shape[0]
    # Lane-aligned batch tile (multiple of 128), capped so the double-buffered
    # z tile (2 * TILE_B * n_z * 4B ~= 6.4 MiB at 8192) stays comfortably under
    # the v7x 32 MiB scoped / 64 MiB physical per-core VMEM budget.
    tile_b = min(max_tile_b, _round_up(max(B, 1), 128))
    padded_b = _round_up(B, tile_b)
    num_tiles = padded_b // tile_b
    if padded_b != B:
        z = jnp.pad(z, ((0, padded_b - B), (0, 0)))  # tail rows sliced off below

    w1, b1 = params["w1"], params["b1"]
    w2, b2 = params["w2"], params["b2"]
    w3, b3 = params["w3"], params["b3"]
    w4, b4 = params["w4"], params["b4"]

    def const_spec(arr):
        # Full-array block with a grid-invariant index -> DMA'd once, then
        # resident in VMEM for every grid step.
        return pl.BlockSpec(arr.shape, lambda i: (0,) * arr.ndim)

    weight_bytes = sum(int(a.size) * a.dtype.itemsize
                       for a in (w1, b1, w2, b2, w3, b3, w4, b4))
    cost = pl.CostEstimate(
        flops=2 * padded_b * sum(fi * fo for fi, fo in _LAYER_DIMS),
        transcendentals=padded_b,                     # sigmoid
        bytes_accessed=padded_b * n_z * 4 + padded_b * 4 + weight_bytes,
    )

    out = pl.pallas_call(
        dz_kernel,
        out_shape=jax.ShapeDtypeStruct((num_tiles, 1, tile_b), jnp.float32),
        grid=(num_tiles,),
        in_specs=[
            pl.BlockSpec((tile_b, n_z), lambda i: (i, 0)),   # z streams per tile
            const_spec(w1), const_spec(b1),
            const_spec(w2), const_spec(b2),
            const_spec(w3), const_spec(b3),
            const_spec(w4), const_spec(b4),
        ],
        out_specs=pl.BlockSpec((1, 1, tile_b), lambda i: (i, 0, 0)),
        compiler_params=pltpu.CompilerParams(
            dimension_semantics=("parallel",)),
        cost_estimate=cost,
    )(z, w1, b1, w2, b2, w3, b3, w4, b4)

    # (num_tiles, 1, tile_b) -> (padded_b,) -> drop padding -> (B, 1)
    return out.reshape(padded_b)[:B].reshape(B, 1)


def init_params(key):
    """Deterministic init mirroring the PyTorch module.

    Weights stay in PyTorch (out, in) layout; biases are (out, 1) so they
    broadcast across the batch/lane axis inside the transposed-layout kernel.
    """
    params = {}
    for i, (fan_in, fan_out) in enumerate(_LAYER_DIMS, start=1):
        key, kw, kb = jax.random.split(key, 3)
        bound = 1.0 / jnp.sqrt(fan_in)
        params[f"w{i}"] = jax.random.uniform(
            kw, (fan_out, fan_in), jnp.float32, -bound, bound)
        params[f"b{i}"] = jax.random.uniform(
            kb, (fan_out, 1), jnp.float32, -bound, bound)
    return params


if __name__ == "__main__":
    key = jax.random.PRNGKey(0)
    kz, kp = jax.random.split(key)

    B = 64  # small demo batch; kernel pads to one 128-wide lane tile
    z = jax.random.normal(kz, (B, n_z), jnp.float32)
    params = init_params(kp)

    out = jax.block_until_ready(dz_forward(z, params))

    # Pure-JAX reference of the same math (PyTorch semantics: x @ W.T + b).
    h = z
    for i in range(1, 4):
        h = jnp.maximum(h @ params[f"w{i}"].T + params[f"b{i}"].T, 0.0)
    ref = jax.nn.sigmoid(h @ params["w4"].T + params["b4"].T)

    assert out.shape == (B, 1)
    assert jnp.allclose(out, ref, atol=1e-5, rtol=1e-5)

    print("KERNEL_OK")
</pallas_src>

<mosaic_0001>
module attributes {stable_mosaic.version = 11 : i64} {
  func.func @dz_kernel(%arg0: i32, %arg1: memref<128x100xf32, #tpu.memory_space<vmem>>, %arg2: memref<64x100xf32, #tpu.memory_space<vmem>>, %arg3: memref<64x1xf32, #tpu.memory_space<vmem>>, %arg4: memref<32x64xf32, #tpu.memory_space<vmem>>, %arg5: memref<32x1xf32, #tpu.memory_space<vmem>>, %arg6: memref<16x32xf32, #tpu.memory_space<vmem>>, %arg7: memref<16x1xf32, #tpu.memory_space<vmem>>, %arg8: memref<1x16xf32, #tpu.memory_space<vmem>>, %arg9: memref<1x1xf32, #tpu.memory_space<vmem>>, %arg10: memref<1x1x128xf32, #tpu.memory_space<vmem>>) attributes {dimension_semantics = [#tpu.dimension_semantics<parallel>], iteration_bounds = array<i64: 1>, scalar_prefetch = 0 : i64, scratch_operands = 0 : i64, tpu.core_type = #tpu.core_type<tc>, window_params = [{transform_indices = @transform_0, window_bounds = array<i64: 128, 100>}, {pipeline_mode = #tpu.pipeline_mode<synchronous>, transform_indices = @transform_1, window_bounds = array<i64: 64, 100>}, {pipeline_mode = #tpu.pipeline_mode<synchronous>, transform_indices = @transform_2, window_bounds = array<i64: 64, 1>}, {pipeline_mode = #tpu.pipeline_mode<synchronous>, transform_indices = @transform_3, window_bounds = array<i64: 32, 64>}, {pipeline_mode = #tpu.pipeline_mode<synchronous>, transform_indices = @transform_4, window_bounds = array<i64: 32, 1>}, {pipeline_mode = #tpu.pipeline_mode<synchronous>, transform_indices = @transform_5, window_bounds = array<i64: 16, 32>}, {pipeline_mode = #tpu.pipeline_mode<synchronous>, transform_indices = @transform_6, window_bounds = array<i64: 16, 1>}, {pipeline_mode = #tpu.pipeline_mode<synchronous>, transform_indices = @transform_7, window_bounds = array<i64: 1, 16>}, {pipeline_mode = #tpu.pipeline_mode<synchronous>, transform_indices = @transform_8, window_bounds = array<i64: 1, 1>}, {transform_indices = @transform_9, window_bounds = array<i64: 1, 1, 128>}]} {
    %c0 = arith.constant 0 : index
    %c0_0 = arith.constant 0 : index
    %0 = vector.load %arg1[%c0, %c0_0] : memref<128x100xf32, #tpu.memory_space<vmem>>, vector<128x100xf32>
    %1 = tpu.transpose %0, [1, 0] : vector<128x100xf32> -> vector<100x128xf32>
    %c0_1 = arith.constant 0 : index
    %c0_2 = arith.constant 0 : index
    %2 = vector.load %arg2[%c0_1, %c0_2] : memref<64x100xf32, #tpu.memory_space<vmem>>, vector<64x100xf32>
    %cst = arith.constant dense<0.000000e+00> : vector<64x128xf32>
    %3 = tpu.matmul %2, %1, %cst {dimension_numbers = #tpu.dot_dimension_numbers<[1], [0], [0], [1], [0, 0, 1, 1], [], []>} : vector<64x100xf32>, vector<100x128xf32>, vector<64x128xf32> -> vector<64x128xf32>
    %c0_3 = arith.constant 0 : index
    %c0_4 = arith.constant 0 : index
    %4 = vector.load %arg3[%c0_3, %c0_4] : memref<64x1xf32, #tpu.memory_space<vmem>>, vector<64x1xf32>
    %5 = vector.broadcast %4 : vector<64x1xf32> to vector<64x128xf32>
    %6 = arith.addf %3, %5 : vector<64x128xf32>
    %cst_5 = arith.constant 0.000000e+00 : f32
    %7 = vector.broadcast %cst_5 : f32 to vector<64x128xf32>
    %8 = arith.maximumf %6, %7 : vector<64x128xf32>
    %c0_6 = arith.constant 0 : index
    %c0_7 = arith.constant 0 : index
    %9 = vector.load %arg4[%c0_6, %c0_7] : memref<32x64xf32, #tpu.memory_space<vmem>>, vector<32x64xf32>
    %cst_8 = arith.constant dense<0.000000e+00> : vector<32x128xf32>
    %10 = tpu.matmul %9, %8, %cst_8 {dimension_numbers = #tpu.dot_dimension_numbers<[1], [0], [0], [1], [0, 0, 1, 1], [], []>} : vector<32x64xf32>, vector<64x128xf32>, vector<32x128xf32> -> vector<32x128xf32>
    %c0_9 = arith.constant 0 : index
    %c0_10 = arith.constant 0 : index
    %11 = vector.load %arg5[%c0_9, %c0_10] : memref<32x1xf32, #tpu.memory_space<vmem>>, vector<32x1xf32>
    %12 = vector.broadcast %11 : vector<32x1xf32> to vector<32x128xf32>
    %13 = arith.addf %10, %12 : vector<32x128xf32>
    %cst_11 = arith.constant 0.000000e+00 : f32
    %14 = vector.broadcast %cst_11 : f32 to vector<32x128xf32>
    %15 = arith.maximumf %13, %14 : vector<32x128xf32>
    %c0_12 = arith.constant 0 : index
    %c0_13 = arith.constant 0 : index
    %16 = vector.load %arg6[%c0_12, %c0_13] : memref<16x32xf32, #tpu.memory_space<vmem>>, vector<16x32xf32>
    %cst_14 = arith.constant dense<0.000000e+00> : vector<16x128xf32>
    %17 = tpu.matmul %16, %15, %cst_14 {dimension_numbers = #tpu.dot_dimension_numbers<[1], [0], [0], [1], [0, 0, 1, 1], [], []>} : vector<16x32xf32>, vector<32x128xf32>, vector<16x128xf32> -> vector<16x128xf32>
    %c0_15 = arith.constant 0 : index
    %c0_16 = arith.constant 0 : index
    %18 = vector.load %arg7[%c0_15, %c0_16] : memref<16x1xf32, #tpu.memory_space<vmem>>, vector<16x1xf32>
    %19 = vector.broadcast %18 : vector<16x1xf32> to vector<16x128xf32>
    %20 = arith.addf %17, %19 : vector<16x128xf32>
    %cst_17 = arith.constant 0.000000e+00 : f32
    %21 = vector.broadcast %cst_17 : f32 to vector<16x128xf32>
    %22 = arith.maximumf %20, %21 : vector<16x128xf32>
    %c0_18 = arith.constant 0 : index
    %c0_19 = arith.constant 0 : index
    %23 = vector.load %arg8[%c0_18, %c0_19] : memref<1x16xf32, #tpu.memory_space<vmem>>, vector<1x16xf32>
    %cst_20 = arith.constant dense<0.000000e+00> : vector<1x128xf32>
    %24 = tpu.matmul %23, %22, %cst_20 {dimension_numbers = #tpu.dot_dimension_numbers<[1], [0], [0], [1], [0, 0, 1, 1], [], []>} : vector<1x16xf32>, vector<16x128xf32>, vector<1x128xf32> -> vector<1x128xf32>
    %c0_21 = arith.constant 0 : index
    %c0_22 = arith.constant 0 : index
    %25 = vector.load %arg9[%c0_21, %c0_22] : memref<1x1xf32, #tpu.memory_space<vmem>>, vector<1x1xf32>
    %26 = vector.broadcast %25 : vector<1x1xf32> to vector<1x128xf32>
    %27 = arith.addf %24, %26 : vector<1x128xf32>
    %28 = arith.negf %27 : vector<1x128xf32>
    %29 = math.exp %28 : vector<1x128xf32>
    %cst_23 = arith.constant 1.000000e+00 : f32
    %30 = vector.broadcast %cst_23 : f32 to vector<1x128xf32>
    %31 = arith.addf %30, %29 : vector<1x128xf32>
    %32 = arith.divf %30, %31 : vector<1x128xf32>
    %33 = vector.shape_cast %32 : vector<1x128xf32> to vector<1x1x128xf32>
    %c0_24 = arith.constant 0 : index
    %c0_25 = arith.constant 0 : index
    %c0_26 = arith.constant 0 : index
    %34 = vector.load %arg10[%c0_24, %c0_25, %c0_26] : memref<1x1x128xf32, #tpu.memory_space<vmem>>, vector<1x1x128xf32>
    tpu.vector_store %arg10[%c0_24, %c0_25, %c0_26], %33 {strides = array<i32>} : memref<1x1x128xf32, #tpu.memory_space<vmem>>, vector<1x1x128xf32>,
    return
  }
  func.func @transform_0(%arg0: i32) -> (i32, i32) {
    %c0_i32 = arith.constant 0 : i32
    %c0_i32_0 = arith.constant 0 : i32
    return %arg0, %c0_i32 : i32, i32
  }
  func.func @transform_1(%arg0: i32) -> (i32, i32) {
    %c0_i32 = arith.constant 0 : i32
    %c0_i32_0 = arith.constant 0 : i32
    %c0_i32_1 = arith.constant 0 : i32
    return %c0_i32, %c0_i32_0 : i32, i32
  }
  func.func @transform_2(%arg0: i32) -> (i32, i32) {
    %c0_i32 = arith.constant 0 : i32
    %c0_i32_0 = arith.constant 0 : i32
    %c0_i32_1 = arith.constant 0 : i32
    return %c0_i32, %c0_i32_0 : i32, i32
  }
  func.func @transform_3(%arg0: i32) -> (i32, i32) {
    %c0_i32 = arith.constant 0 : i32
    %c0_i32_0 = arith.constant 0 : i32
    %c0_i32_1 = arith.constant 0 : i32
    return %c0_i32, %c0_i32_0 : i32, i32
  }
  func.func @transform_4(%arg0: i32) -> (i32, i32) {
    %c0_i32 = arith.constant 0 : i32
    %c0_i32_0 = arith.constant 0 : i32
    %c0_i32_1 = arith.constant 0 : i32
    return %c0_i32, %c0_i32_0 : i32, i32
  }
  func.func @transform_5(%arg0: i32) -> (i32, i32) {
    %c0_i32 = arith.constant 0 : i32
    %c0_i32_0 = arith.constant 0 : i32
    %c0_i32_1 = arith.constant 0 : i32
    return %c0_i32, %c0_i32_0 : i32, i32
  }
  func.func @transform_6(%arg0: i32) -> (i32, i32) {
    %c0_i32 = arith.constant 0 : i32
    %c0_i32_0 = arith.constant 0 : i32
    %c0_i32_1 = arith.constant 0 : i32
    return %c0_i32, %c0_i32_0 : i32, i32
  }
  func.func @transform_7(%arg0: i32) -> (i32, i32) {
    %c0_i32 = arith.constant 0 : i32
    %c0_i32_0 = arith.constant 0 : i32
    %c0_i32_1 = arith.constant 0 : i32
    return %c0_i32, %c0_i32_0 : i32, i32
  }
  func.func @transform_8(%arg0: i32) -> (i32, i32) {
    %c0_i32 = arith.constant 0 : i32
    %c0_i32_0 = arith.constant 0 : i32
    %c0_i32_1 = arith.constant 0 : i32
    return %c0_i32, %c0_i32_0 : i32, i32
  }
  func.func @transform_9(%arg0: i32) -> (i32, i32, i32) {
    %c0_i32 = arith.constant 0 : i32
    %c0_i32_0 = arith.constant 0 : i32
    %c0_i32_1 = arith.constant 0 : i32
    return %arg0, %c0_i32, %c0_i32_0 : i32, i32, i32
  }
}

</mosaic_0001>

<llo_original>
// kernel: dz_forward.1
$region0: #{dz_forward.1}
  #allocation0 [shape = 'u32[]', space=smem, size = 0x4, offset = 0x4, fixed_abs, tag = 'smem constant byte address 0x4 - core index']
  #allocation1 [shape = 'u32[144,128]{1,0:T(1,128)}', space=vmem, size = 0x12000, scoped, tag = 'internal scratch']
  #allocation2 [shape = 'f32[1,1]{1,0:T(1,128)S(1)}', space=vmem, size = 0x200, scoped, tag = 'scoped memory for dz_forward.1']
  %s0 = inlined_call_operand.vmem [shape: f32[128,100], index: 0, kind: input, shape index: {}]
  %s1 = inlined_call_operand.vmem [shape: f32[64,100], index: 1, kind: input, shape index: {}]
  %s2 = inlined_call_operand.vmem [shape: f32[64,1], index: 2, kind: input, shape index: {}]
  %s3 = inlined_call_operand.vmem [shape: f32[32,64], index: 3, kind: input, shape index: {}]
  %s4 = inlined_call_operand.vmem [shape: f32[32,1], index: 4, kind: input, shape index: {}]
  %s5 = inlined_call_operand.vmem [shape: f32[16,32], index: 5, kind: input, shape index: {}]
  %s6 = inlined_call_operand.vmem [shape: f32[16,1], index: 6, kind: input, shape index: {}]
  %s7 = inlined_call_operand.vmem [shape: f32[1,16], index: 7, kind: input, shape index: {}]
  %s8 = inlined_call_operand.<no memory space> [shape: f32[1,1], index: 8, kind: input, shape index: {}]
  %s9 = inlined_call_operand.vmem [shape: f32[1,1,128], index: 9, kind: output, shape index: {}]
  %s10 = sld [smem:[#allocation0]]
  $region46: #{dz_forward.1} parent=0
    _
  %s12 = ssub.s32 1, %s10
  %s13 = scalar_select 0, %s12, %s10
  %v14 = vstv %s8
  %15 = vst [vmem:[#allocation2] sm:$0x1] %v14
  // Predicated region
  $region2: #{dz_forward.1} parent=0 // pred_check
    _
  $region3: #{dz_forward.1} parent=0 // pred_check_branch
    %17 = sbr.rel (0) target = $region5
  $region4: #{dz_forward.1} parent=0 // pred_region
    _
  $region5: #{dz_forward.1} parent=0 // pred_fallthru
    _
  // Predicated region
  $region6: #{dz_forward.1} parent=0 // pred_check
    _
  $region7: #{dz_forward.1} parent=0 // pred_check_branch
    %19 = sbr.rel (0) target = $region9
  $region8: #{dz_forward.1} parent=0 // pred_region
    _
  $region9: #{dz_forward.1} parent=0 // pred_fallthru
    _
  // Predicated region
  $region10: #{dz_forward.1} parent=0 // pred_check
    _
  $region11: #{dz_forward.1} parent=0 // pred_check_branch
    %21 = sbr.rel (0) target = $region13
  $region12: #{dz_forward.1} parent=0 // pred_region
    _
  $region13: #{dz_forward.1} parent=0 // pred_fallthru
    _
  // Predicated region
  $region14: #{dz_forward.1} parent=0 // pred_check
    _
  $region15: #{dz_forward.1} parent=0 // pred_check_branch
    %23 = sbr.rel (0) target = $region17
  $region16: #{dz_forward.1} parent=0 // pred_region
    _
  $region17: #{dz_forward.1} parent=0 // pred_fallthru
    _
  // Predicated region
  $region18: #{dz_forward.1} parent=0 // pred_check
    _
  $region19: #{dz_forward.1} parent=0 // pred_check_branch
    %25 = sbr.rel (0) target = $region21
  $region20: #{dz_forward.1} parent=0 // pred_region
    _
  $region21: #{dz_forward.1} parent=0 // pred_fallthru
    _
  // Predicated region
  $region22: #{dz_forward.1} parent=0 // pred_check
    _
  $region23: #{dz_forward.1} parent=0 // pred_check_branch
    %27 = sbr.rel (0) target = $region25
  $region24: #{dz_forward.1} parent=0 // pred_region
    _
  $region25: #{dz_forward.1} parent=0 // pred_fallthru
    _
  // Predicated region
  $region26: #{dz_forward.1} parent=0 // pred_check
    _
  $region27: #{dz_forward.1} parent=0 // pred_check_branch
    %29 = sbr.rel (0) target = $region29
  $region28: #{dz_forward.1} parent=0 // pred_region
    _
  $region29: #{dz_forward.1} parent=0 // pred_fallthru
    _
  // Predicated region
  $region30: #{dz_forward.1} parent=0 // pred_check
    _
  $region31: #{dz_forward.1} parent=0 // pred_check_branch
    %31 = sbr.rel (0) target = $region33
  $region32: #{dz_forward.1} parent=0 // pred_region
    _
  $region33: #{dz_forward.1} parent=0 // pred_fallthru
    _
  // Predicated region
  $region34: #{dz_forward.1} parent=0 // pred_check
    _
  $region35: #{dz_forward.1} parent=0 // pred_check_branch
    %33 = sbr.rel (0) target = $region37
  $region36: #{dz_forward.1} parent=0 // pred_region
    _
  $region37: #{dz_forward.1} parent=0 // pred_fallthru
    _
  %v34 = vld [vmem:[%s0] sm:$0xff]
  %v35 = vld [vmem:[%s0 + $0x8] sm:$0xff]
  %v36 = vld [vmem:[%s0 + $0x10] sm:$0xff]
  %v37 = vld [vmem:[%s0 + $0x18] sm:$0xff]
  %v38 = vld [vmem:[%s0 + $0x20] sm:$0xff]
  %v39 = vld [vmem:[%s0 + $0x28] sm:$0xff]
  %v40 = vld [vmem:[%s0 + $0x30] sm:$0xff]
  %v41 = vld [vmem:[%s0 + $0x38] sm:$0xff]
  %v42 = vld [vmem:[%s0 + $0x40] sm:$0xff]
  %v43 = vld [vmem:[%s0 + $0x48] sm:$0xff]
  %v44 = vld [vmem:[%s0 + $0x50] sm:$0xff]
  %v45 = vld [vmem:[%s0 + $0x58] sm:$0xff]
  %v46 = vld [vmem:[%s0 + $0x60] sm:$0xff]
  %v47 = vld [vmem:[%s0 + $0x68] sm:$0xff]
  %v48 = vld [vmem:[%s0 + $0x70] sm:$0xff]
  %v49 = vld [vmem:[%s0 + $0x78] sm:$0xff]
  %v50 = vld [vmem:[%s1] sm:$0xff]
  %v51 = vld [vmem:[%s1 + $0x8] sm:$0xff]
  %v52 = vld [vmem:[%s1 + $0x10] sm:$0xff]
  %v53 = vld [vmem:[%s1 + $0x18] sm:$0xff]
  %v54 = vld [vmem:[%s1 + $0x20] sm:$0xff]
  %v55 = vld [vmem:[%s1 + $0x28] sm:$0xff]
  %v56 = vld [vmem:[%s1 + $0x30] sm:$0xff]
  %v57 = vld [vmem:[%s1 + $0x38] sm:$0xff]
  %v58 = vld [vmem:[%s2] sm:$0xff]
  %v59 = vld [vmem:[%s2 + $0x8] sm:$0xff]
  %v60 = vld [vmem:[%s2 + $0x10] sm:$0xff]
  %v61 = vld [vmem:[%s2 + $0x18] sm:$0xff]
  %v62 = vld [vmem:[%s2 + $0x20] sm:$0xff]
  %v63 = vld [vmem:[%s2 + $0x28] sm:$0xff]
  %v64 = vld [vmem:[%s2 + $0x30] sm:$0xff]
  %v65 = vld [vmem:[%s2 + $0x38] sm:$0xff]
  %67 = vset.pattern.permute.xlu0 0
  %68 = vperm.xlu0 %67, %v58
  %v69 = vpop.permute.xlu0 %68
  %72 = vset.pattern.permute.xlu0 0
  %73 = vperm.xlu0 %72, %v59
  %v74 = vpop.permute.xlu0 %73
  %77 = vset.pattern.permute.xlu0 0
  %78 = vperm.xlu0 %77, %v60
  %v79 = vpop.permute.xlu0 %78
  %82 = vset.pattern.permute.xlu0 0
  %83 = vperm.xlu0 %82, %v61
  %v84 = vpop.permute.xlu0 %83
  %87 = vset.pattern.permute.xlu0 0
  %88 = vperm.xlu0 %87, %v62
  %v89 = vpop.permute.xlu0 %88
  %92 = vset.pattern.permute.xlu0 0
  %93 = vperm.xlu0 %92, %v63
  %v94 = vpop.permute.xlu0 %93
  %97 = vset.pattern.permute.xlu0 0
  %98 = vperm.xlu0 %97, %v64
  %v99 = vpop.permute.xlu0 %98
  %102 = vset.pattern.permute.xlu0 0
  %103 = vperm.xlu0 %102, %v65
  %v104 = vpop.permute.xlu0 %103
  %vm106 = vcmask 818176
  %v108 = vsel %vm106, %v50, 0
  %v111 = vsel %vm106, %v51, 0
  %v114 = vsel %vm106, %v52, 0
  %v117 = vsel %vm106, %v53, 0
  %v120 = vsel %vm106, %v54, 0
  %v123 = vsel %vm106, %v55, 0
  %v126 = vsel %vm106, %v56, 0
  %v129 = vsel %vm106, %v57, 0
  %v132 = vsel %vm106, %v34, 0
  %v135 = vsel %vm106, %v35, 0
  %v138 = vsel %vm106, %v36, 0
  %v141 = vsel %vm106, %v37, 0
  %v144 = vsel %vm106, %v38, 0
  %v147 = vsel %vm106, %v39, 0
  %v150 = vsel %vm106, %v40, 0
  %v153 = vsel %vm106, %v41, 0
  %v156 = vsel %vm106, %v42, 0
  %v159 = vsel %vm106, %v43, 0
  %v162 = vsel %vm106, %v44, 0
  %v165 = vsel %vm106, %v45, 0
  %v168 = vsel %vm106, %v46, 0
  %v171 = vsel %vm106, %v47, 0
  %v174 = vsel %vm106, %v48, 0
  %v177 = vsel %vm106, %v49, 0
  %179 = vmatprep.subr.mxu0 0.0
  %180 = vmatpush1.xpose.msra.mxu0 %v132
  %181 = vmatprep.subr.mxu0 0.0
  %182 = vmatpush1.xpose.msra.mxu0 %v135
  %183 = vmatprep.subr.mxu0 0.0
  %184 = vmatpush1.xpose.msra.mxu0 %v138
  %185 = vmatprep.subr.mxu0 0.0
  %186 = vmatpush1.xpose.msra.mxu0 %v141
  %187 = vmatprep.subr.mxu0 0.0
  %188 = vmatpush1.xpose.msra.mxu0 %v144
  %189 = vmatprep.subr.mxu0 0.0
  %190 = vmatpush1.xpose.msra.mxu0 %v147
  %191 = vmatprep.subr.mxu0 0.0
  %192 = vmatpush1.xpose.msra.mxu0 %v150
  %193 = vmatprep.subr.mxu0 0.0
  %194 = vmatpush1.xpose.msra.mxu0 %v153
  %195 = vmatprep.subr.mxu0 0.0
  %196 = vmatpush1.xpose.msra.mxu0 %v156
  %197 = vmatprep.subr.mxu0 0.0
  %198 = vmatpush1.xpose.msra.mxu0 %v159
  %199 = vmatprep.subr.mxu0 0.0
  %200 = vmatpush1.xpose.msra.mxu0 %v162
  %201 = vmatprep.subr.mxu0 0.0
  %202 = vmatpush1.xpose.msra.mxu0 %v165
  %203 = vmatprep.subr.mxu0 0.0
  %204 = vmatpush1.xpose.msra.mxu0 %v168
  %205 = vmatprep.subr.mxu0 0.0
  %206 = vmatpush1.xpose.msra.mxu0 %v171
  %207 = vmatprep.subr.mxu0 0.0
  %208 = vmatpush1.xpose.msra.mxu0 %v174
  %209 = vmatprep.subr.mxu0 0.0
  %210 = vmatpush1.xpose.msra.mxu0 %v177
  %211 = vmatprep.subr.mxu0 0.0
  %212 = vmatpush1.xpose.msra.mxu0 0.0
  %213 = vmatprep.subr.mxu0 0.0
  %214 = vmatpush1.xpose.msra.mxu0 0.0
  %215 = vmatprep.subr.mxu0 0.0
  %216 = vmatpush1.xpose.msra.mxu0 0.0
  %217 = vmatprep.subr.mxu0 0.0
  %218 = vmatpush1.xpose.msra.mxu0 0.0
  %219 = vmatprep.subr.mxu0 0.0
  %220 = vmatpush1.xpose.msra.mxu0 0.0
  %221 = vmatprep.subr.mxu0 0.0
  %222 = vmatpush1.xpose.msra.mxu0 0.0
  %223 = vmatprep.subr.mxu0 0.0
  %224 = vmatpush1.xpose.msra.mxu0 0.0
  %225 = vmatprep.subr.mxu0 0.0
  %226 = vmatpush1.xpose.msra.mxu0 0.0
  %227 = vmatprep.subr.mxu0 0.0
  %228 = vmatpush1.xpose.msra.mxu0 0.0
  %229 = vmatprep.subr.mxu0 0.0
  %230 = vmatpush1.xpose.msra.mxu0 0.0
  %231 = vmatprep.subr.mxu0 0.0
  %232 = vmatpush1.xpose.msra.mxu0 0.0
  %233 = vmatprep.subr.mxu0 0.0
  %234 = vmatpush1.xpose.msra.mxu0 0.0
  %235 = vmatprep.subr.mxu0 0.0
  %236 = vmatpush1.xpose.msra.mxu0 0.0
  %237 = vmatprep.subr.mxu0 0.0
  %238 = vmatpush1.xpose.msra.mxu0 0.0
  %239 = vmatprep.subr.mxu0 0.0
  %240 = vmatpush1.xpose.msra.mxu0 0.0
  %241 = vmatprep.subr.mxu0 0.0
  %242 = vmatpush1.xpose.msra.mxu0 0.0
  %243 = vmatprep.mubr.f32.mxu0 0.0
  %244 = vmatmul.mubr.f32.gmra.mrb[0].mxu0 %v108
  %v245 = vpop.f32.mrb[0].mxu0
  %v246 = vadd.f32 %v69, %v245
  %v247 = vpop.f32.mrb[0].mxu0
  %248 = vmatprep.mubr.f32.mxu0 0.0
  %249 = vmatmul.mubr.f32.gmra.mrb[0].mxu0 %v111
  %v250 = vpop.f32.mrb[0].mxu0
  %v251 = vadd.f32 %v74, %v250
  %v252 = vpop.f32.mrb[0].mxu0
  %253 = vmatprep.mubr.f32.mxu0 0.0
  %254 = vmatmul.mubr.f32.gmra.mrb[0].mxu0 %v114
  %v255 = vpop.f32.mrb[0].mxu0
  %v256 = vadd.f32 %v79, %v255
  %v257 = vpop.f32.mrb[0].mxu0
  %258 = vmatprep.mubr.f32.mxu0 0.0
  %259 = vmatmul.mubr.f32.gmra.mrb[0].mxu0 %v117
  %v260 = vpop.f32.mrb[0].mxu0
  %v261 = vadd.f32 %v84, %v260
  %v262 = vpop.f32.mrb[0].mxu0
  %263 = vmatprep.mubr.f32.mxu0 0.0
  %264 = vmatmul.mubr.f32.gmra.mrb[0].mxu0 %v120
  %v265 = vpop.f32.mrb[0].mxu0
  %v266 = vadd.f32 %v89, %v265
  %v267 = vpop.f32.mrb[0].mxu0
  %268 = vmatprep.mubr.f32.mxu0 0.0
  %269 = vmatmul.mubr.f32.gmra.mrb[0].mxu0 %v123
  %v270 = vpop.f32.mrb[0].mxu0
  %v271 = vadd.f32 %v94, %v270
  %v272 = vpop.f32.mrb[0].mxu0
  %273 = vmatprep.mubr.f32.mxu0 0.0
  %274 = vmatmul.mubr.f32.gmra.mrb[0].mxu0 %v126
  %v275 = vpop.f32.mrb[0].mxu0
  %v276 = vadd.f32 %v99, %v275
  %v277 = vpop.f32.mrb[0].mxu0
  %278 = vmatprep.mubr.f32.mxu0 0.0
  %279 = vmatmul.mubr.f32.gmra.mrb[0].mxu0 %v129
  %v280 = vpop.f32.mrb[0].mxu0
  %v281 = vadd.f32 %v104, %v280
  %v282 = vpop.f32.mrb[0].mxu0
  %283 = vdwg.mxu0
  %v284 = vmax.f32 %v246, 0.0
  %v285 = vmax.f32 %v251, 0.0
  %v286 = vmax.f32 %v256, 0.0
  %v287 = vmax.f32 %v261, 0.0
  %v288 = vmax.f32 %v266, 0.0
  %v289 = vmax.f32 %v271, 0.0
  %v290 = vmax.f32 %v276, 0.0
  %v291 = vmax.f32 %v281, 0.0
  %v292 = vld [vmem:[%s3] sm:$0xff]
  %v293 = vld [vmem:[%s3 + $0x8] sm:$0xff]
  %v294 = vld [vmem:[%s3 + $0x10] sm:$0xff]
  %v295 = vld [vmem:[%s3 + $0x18] sm:$0xff]
  %v296 = vld [vmem:[%s4] sm:$0xff]
  %v297 = vld [vmem:[%s4 + $0x8] sm:$0xff]
  %v298 = vld [vmem:[%s4 + $0x10] sm:$0xff]
  %v299 = vld [vmem:[%s4 + $0x18] sm:$0xff]
  %301 = vset.pattern.permute.xlu0 0
  %302 = vperm.xlu0 %301, %v296
  %v303 = vpop.permute.xlu0 %302
  %306 = vset.pattern.permute.xlu0 0
  %307 = vperm.xlu0 %306, %v297
  %v308 = vpop.permute.xlu0 %307
  %311 = vset.pattern.permute.xlu0 0
  %312 = vperm.xlu0 %311, %v298
  %v313 = vpop.permute.xlu0 %312
  %316 = vset.pattern.permute.xlu0 0
  %317 = vperm.xlu0 %316, %v299
  %v318 = vpop.permute.xlu0 %317
  %vm320 = vcmask 523264
  %v322 = vsel %vm320, %v292, 0
  %v325 = vsel %vm320, %v293, 0
  %v328 = vsel %vm320, %v294, 0
  %v331 = vsel %vm320, %v295, 0
  %333 = vmatprep.subr.mxu0 0.0
  %334 = vmatpush1.msra.mxu0 %v284
  %335 = vmatprep.subr.mxu0 0.0
  %336 = vmatpush1.msra.mxu0 %v285
  %337 = vmatprep.subr.mxu0 0.0
  %338 = vmatpush1.msra.mxu0 %v286
  %339 = vmatprep.subr.mxu0 0.0
  %340 = vmatpush1.msra.mxu0 %v287
  %341 = vmatprep.subr.mxu0 0.0
  %342 = vmatpush1.msra.mxu0 %v288
  %343 = vmatprep.subr.mxu0 0.0
  %344 = vmatpush1.msra.mxu0 %v289
  %345 = vmatprep.subr.mxu0 0.0
  %346 = vmatpush1.msra.mxu0 %v290
  %347 = vmatprep.subr.mxu0 0.0
  %348 = vmatpush1.msra.mxu0 %v291
  %349 = vmatprep.subr.mxu0 0.0
  %350 = vmatpush1.msra.mxu0 0.0
  %351 = vmatprep.subr.mxu0 0.0
  %352 = vmatpush1.msra.mxu0 0.0
  %353 = vmatprep.subr.mxu0 0.0
  %354 = vmatpush1.msra.mxu0 0.0
  %355 = vmatprep.subr.mxu0 0.0
  %356 = vmatpush1.msra.mxu0 0.0
  %357 = vmatprep.subr.mxu0 0.0
  %358 = vmatpush1.msra.mxu0 0.0
  %359 = vmatprep.subr.mxu0 0.0
  %360 = vmatpush1.msra.mxu0 0.0
  %361 = vmatprep.subr.mxu0 0.0
  %362 = vmatpush1.msra.mxu0 0.0
  %363 = vmatprep.subr.mxu0 0.0
  %364 = vmatpush1.msra.mxu0 0.0
  %365 = vmatprep.subr.mxu0 0.0
  %366 = vmatpush1.msra.mxu0 0.0
  %367 = vmatprep.subr.mxu0 0.0
  %368 = vmatpush1.msra.mxu0 0.0
  %369 = vmatprep.subr.mxu0 0.0
  %370 = vmatpush1.msra.mxu0 0.0
  %371 = vmatprep.subr.mxu0 0.0
  %372 = vmatpush1.msra.mxu0 0.0
  %373 = vmatprep.subr.mxu0 0.0
  %374 = vmatpush1.msra.mxu0 0.0
  %375 = vmatprep.subr.mxu0 0.0
  %376 = vmatpush1.msra.mxu0 0.0
  %377 = vmatprep.subr.mxu0 0.0
  %378 = vmatpush1.msra.mxu0 0.0
  %379 = vmatprep.subr.mxu0 0.0
  %380 = vmatpush1.msra.mxu0 0.0
  %381 = vmatprep.subr.mxu0 0.0
  %382 = vmatpush1.msra.mxu0 0.0
  %383 = vmatprep.subr.mxu0 0.0
  %384 = vmatpush1.msra.mxu0 0.0
  %385 = vmatprep.subr.mxu0 0.0
  %386 = vmatpush1.msra.mxu0 0.0
  %387 = vmatprep.subr.mxu0 0.0
  %388 = vmatpush1.msra.mxu0 0.0
  %389 = vmatprep.subr.mxu0 0.0
  %390 = vmatpush1.msra.mxu0 0.0
  %391 = vmatprep.subr.mxu0 0.0
  %392 = vmatpush1.msra.mxu0 0.0
  %393 = vmatprep.subr.mxu0 0.0
  %394 = vmatpush1.msra.mxu0 0.0
  %395 = vmatprep.subr.mxu0 0.0
  %396 = vmatpush1.msra.mxu0 0.0
  %397 = vmatprep.mubr.f32.mxu0 0.0
  %398 = vmatmul.mubr.f32.gmra.mrb[0].mxu0 %v322
  %v399 = vpop.f32.mrb[0].mxu0
  %v400 = vadd.f32 %v303, %v399
  %v401 = vpop.f32.mrb[0].mxu0
  %402 = vmatprep.mubr.f32.mxu0 0.0
  %403 = vmatmul.mubr.f32.gmra.mrb[0].mxu0 %v325
  %v404 = vpop.f32.mrb[0].mxu0
  %v405 = vadd.f32 %v308, %v404
  %v406 = vpop.f32.mrb[0].mxu0
  %407 = vmatprep.mubr.f32.mxu0 0.0
  %408 = vmatmul.mubr.f32.gmra.mrb[0].mxu0 %v328
  %v409 = vpop.f32.mrb[0].mxu0
  %v410 = vadd.f32 %v313, %v409
  %v411 = vpop.f32.mrb[0].mxu0
  %412 = vmatprep.mubr.f32.mxu0 0.0
  %413 = vmatmul.mubr.f32.gmra.mrb[0].mxu0 %v331
  %v414 = vpop.f32.mrb[0].mxu0
  %v415 = vadd.f32 %v318, %v414
  %v416 = vpop.f32.mrb[0].mxu0
  %417 = vdwg.mxu0
  %v418 = vmax.f32 %v400, 0.0
  %v419 = vmax.f32 %v405, 0.0
  %v420 = vmax.f32 %v410, 0.0
  %v421 = vmax.f32 %v415, 0.0
  %v422 = vld [vmem:[%s5] sm:$0xff]
  %v423 = vld [vmem:[%s5 + $0x8] sm:$0xff]
  %v424 = vld [vmem:[%s6] sm:$0xff]
  %v425 = vld [vmem:[%s6 + $0x8] sm:$0xff]
  %427 = vset.pattern.permute.xlu0 0
  %428 = vperm.xlu0 %427, %v424
  %v429 = vpop.permute.xlu0 %428
  %432 = vset.pattern.permute.xlu0 0
  %433 = vperm.xlu0 %432, %v425
  %v434 = vpop.permute.xlu0 %433
  %vm436 = vcmask 261120
  %v438 = vsel %vm436, %v422, 0
  %v441 = vsel %vm436, %v423, 0
  %443 = vmatprep.subr.mxu0 0.0
  %444 = vmatpush1.msra.mxu0 %v418
  %445 = vmatprep.subr.mxu0 0.0
  %446 = vmatpush1.msra.mxu0 %v419
  %447 = vmatprep.subr.mxu0 0.0
  %448 = vmatpush1.msra.mxu0 %v420
  %449 = vmatprep.subr.mxu0 0.0
  %450 = vmatpush1.msra.mxu0 %v421
  %451 = vmatprep.subr.mxu0 0.0
  %452 = vmatpush1.msra.mxu0 0.0
  %453 = vmatprep.subr.mxu0 0.0
  %454 = vmatpush1.msra.mxu0 0.0
  %455 = vmatprep.subr.mxu0 0.0
  %456 = vmatpush1.msra.mxu0 0.0
  %457 = vmatprep.subr.mxu0 0.0
  %458 = vmatpush1.msra.mxu0 0.0
  %459 = vmatprep.subr.mxu0 0.0
  %460 = vmatpush1.msra.mxu0 0.0
  %461 = vmatprep.subr.mxu0 0.0
  %462 = vmatpush1.msra.mxu0 0.0
  %463 = vmatprep.subr.mxu0 0.0
  %464 = vmatpush1.msra.mxu0 0.0
  %465 = vmatprep.subr.mxu0 0.0
  %466 = vmatpush1.msra.mxu0 0.0
  %467 = vmatprep.subr.mxu0 0.0
  %468 = vmatpush1.msra.mxu0 0.0
  %469 = vmatprep.subr.mxu0 0.0
  %470 = vmatpush1.msra.mxu0 0.0
  %471 = vmatprep.subr.mxu0 0.0
  %472 = vmatpush1.msra.mxu0 0.0
  %473 = vmatprep.subr.mxu0 0.0
  %474 = vmatpush1.msra.mxu0 0.0
  %475 = vmatprep.subr.mxu0 0.0
  %476 = vmatpush1.msra.mxu0 0.0
  %477 = vmatprep.subr.mxu0 0.0
  %478 = vmatpush1.msra.mxu0 0.0
  %479 = vmatprep.subr.mxu0 0.0
  %480 = vmatpush1.msra.mxu0 0.0
  %481 = vmatprep.subr.mxu0 0.0
  %482 = vmatpush1.msra.mxu0 0.0
  %483 = vmatprep.subr.mxu0 0.0
  %484 = vmatpush1.msra.mxu0 0.0
  %485 = vmatprep.subr.mxu0 0.0
  %486 = vmatpush1.msra.mxu0 0.0
  %487 = vmatprep.subr.mxu0 0.0
  %488 = vmatpush1.msra.mxu0 0.0
  %489 = vmatprep.subr.mxu0 0.0
  %490 = vmatpush1.msra.mxu0 0.0
  %491 = vmatprep.subr.mxu0 0.0
  %492 = vmatpush1.msra.mxu0 0.0
  %493 = vmatprep.subr.mxu0 0.0
  %494 = vmatpush1.msra.mxu0 0.0
  %495 = vmatprep.subr.mxu0 0.0
  %496 = vmatpush1.msra.mxu0 0.0
  %497 = vmatprep.subr.mxu0 0.0
  %498 = vmatpush1.msra.mxu0 0.0
  %499 = vmatprep.subr.mxu0 0.0
  %500 = vmatpush1.msra.mxu0 0.0
  %501 = vmatprep.subr.mxu0 0.0
  %502 = vmatpush1.msra.mxu0 0.0
  %503 = vmatprep.subr.mxu0 0.0
  %504 = vmatpush1.msra.mxu0 0.0
  %505 = vmatprep.subr.mxu0 0.0
  %506 = vmatpush1.msra.mxu0 0.0
  %507 = vmatprep.mubr.f32.mxu0 0.0
  %508 = vmatmul.mubr.f32.gmra.mrb[0].mxu0 %v438
  %v509 = vpop.f32.mrb[0].mxu0
  %v510 = vadd.f32 %v429, %v509
  %v511 = vpop.f32.mrb[0].mxu0
  %512 = vmatprep.mubr.f32.mxu0 0.0
  %513 = vmatmul.mubr.f32.gmra.mrb[0].mxu0 %v441
  %v514 = vpop.f32.mrb[0].mxu0
  %v515 = vadd.f32 %v434, %v514
  %v516 = vpop.f32.mrb[0].mxu0
  %517 = vdwg.mxu0
  %v518 = vmax.f32 %v510, 0.0
  %v519 = vmax.f32 %v515, 0.0
  %v520 = vld [vmem:[%s7] sm:$0x1]
  %v521 = vld [vmem:[#allocation2] sm:$0x1]
  %523 = vset.pattern.permute.xlu0 0
  %524 = vperm.xlu0 %523, %v521
  %v525 = vpop.permute.xlu0 %524
  %v527 = vlaneseq
  %v528 = vshrl.u32 %v527, 7
  %v529 = vsub.s32 0, %v528
  %v530 = vrot.slane %v525, %v529
  %vm531 = vcmask 130048
  %v533 = vsel %vm531, %v520, 0
  %535 = vmatprep.subr.mxu0 0.0
  %536 = vmatpush1.msra.mxu0 %v518
  %537 = vmatprep.subr.mxu0 0.0
  %538 = vmatpush1.msra.mxu0 %v519
  %539 = vmatprep.subr.mxu0 0.0
  %540 = vmatpush1.msra.mxu0 0.0
  %541 = vmatprep.subr.mxu0 0.0
  %542 = vmatpush1.msra.mxu0 0.0
  %543 = vmatprep.subr.mxu0 0.0
  %544 = vmatpush1.msra.mxu0 0.0
  %545 = vmatprep.subr.mxu0 0.0
  %546 = vmatpush1.msra.mxu0 0.0
  %547 = vmatprep.subr.mxu0 0.0
  %548 = vmatpush1.msra.mxu0 0.0
  %549 = vmatprep.subr.mxu0 0.0
  %550 = vmatpush1.msra.mxu0 0.0
  %551 = vmatprep.subr.mxu0 0.0
  %552 = vmatpush1.msra.mxu0 0.0
  %553 = vmatprep.subr.mxu0 0.0
  %554 = vmatpush1.msra.mxu0 0.0
  %555 = vmatprep.subr.mxu0 0.0
  %556 = vmatpush1.msra.mxu0 0.0
  %557 = vmatprep.subr.mxu0 0.0
  %558 = vmatpush1.msra.mxu0 0.0
  %559 = vmatprep.subr.mxu0 0.0
  %560 = vmatpush1.msra.mxu0 0.0
  %561 = vmatprep.subr.mxu0 0.0
  %562 = vmatpush1.msra.mxu0 0.0
  %563 = vmatprep.subr.mxu0 0.0
  %564 = vmatpush1.msra.mxu0 0.0
  %565 = vmatprep.subr.mxu0 0.0
  %566 = vmatpush1.msra.mxu0 0.0
  %567 = vmatprep.subr.mxu0 0.0
  %568 = vmatpush1.msra.mxu0 0.0
  %569 = vmatprep.subr.mxu0 0.0
  %570 = vmatpush1.msra.mxu0 0.0
  %571 = vmatprep.subr.mxu0 0.0
  %572 = vmatpush1.msra.mxu0 0.0
  %573 = vmatprep.subr.mxu0 0.0
  %574 = vmatpush1.msra.mxu0 0.0
  %575 = vmatprep.subr.mxu0 0.0
  %576 = vmatpush1.msra.mxu0 0.0
  %577 = vmatprep.subr.mxu0 0.0
  %578 = vmatpush1.msra.mxu0 0.0
  %579 = vmatprep.subr.mxu0 0.0
  %580 = vmatpush1.msra.mxu0 0.0
  %581 = vmatprep.subr.mxu0 0.0
  %582 = vmatpush1.msra.mxu0 0.0
  %583 = vmatprep.subr.mxu0 0.0
  %584 = vmatpush1.msra.mxu0 0.0
  %585 = vmatprep.subr.mxu0 0.0
  %586 = vmatpush1.msra.mxu0 0.0
  %587 = vmatprep.subr.mxu0 0.0
  %588 = vmatpush1.msra.mxu0 0.0
  %589 = vmatprep.subr.mxu0 0.0
  %590 = vmatpush1.msra.mxu0 0.0
  %591 = vmatprep.subr.mxu0 0.0
  %592 = vmatpush1.msra.mxu0 0.0
  %593 = vmatprep.subr.mxu0 0.0
  %594 = vmatpush1.msra.mxu0 0.0
  %595 = vmatprep.subr.mxu0 0.0
  %596 = vmatpush1.msra.mxu0 0.0
  %597 = vmatprep.subr.mxu0 0.0
  %598 = vmatpush1.msra.mxu0 0.0
  %599 = vmatprep.mubr.f32.mxu0 0.0
  %600 = vmatmul.mubr.f32.gmra.mrb[0].mxu0 %v533
  %v601 = vpop.f32.mrb[0].mxu0
  %v602 = vadd.f32 %v530, %v601
  %v603 = vpop.f32.mrb[0].mxu0
  %604 = vdwg.mxu0
  %v605 = vxor.u32 %v602, 2147483648
  %v606 = vmul.f32 %v605, 1.442695
  %v607 = vpow.pop %v606
  %v608 = vadd.f32 %v607, 1.0
  %v609 = vrcp.pop %v608
  %v610 = vmul.f32 1.0, %v609
  %611 = vst [vmem:[%s9] sm:$0x1] %v610
  // Predicated region
  $region38: #{dz_forward.1} parent=0 // pred_check
    _
  $region39: #{dz_forward.1} parent=0 // pred_check_branch
    %613 = sbr.rel (0) target = $region41
  $region40: #{dz_forward.1} parent=0 // pred_region
    _
  $region41: #{dz_forward.1} parent=0 // pred_fallthru
    _
  // Predicated region
  $region42: #{dz_forward.1} parent=0 // pred_check
    _
  $region43: #{dz_forward.1} parent=0 // pred_check_branch
    %615 = sbr.rel (0) target = $region45
  $region44: #{dz_forward.1} parent=0 // pred_region
    _
  $region45: #{dz_forward.1} parent=0 // pred_fallthru
    _

</llo_original>
